<compile_context>
chip_gen: v6e
topology: v6e:2x2x1
jax: 0.10.0
libtpu: 0.0.40
codegen_flags: <defaults>
</compile_context>

<pallas_src>
import functools
import math

import jax
import jax.numpy as jnp
from jax.experimental import pallas as pl
from jax.experimental.pallas import tpu as pltpu

LANE = 128            # TPU lane width; all feature dims are zero-padded to this.
MAX_BATCH_TILE = 256  # batch rows per grid step (shards across TCs on v7x).


def _round_up(n, m):
    return ((n + m - 1) // m) * m


def _epn_kernel(x_ref, w_ref, b_ref, q_ref, amax_ref, *, action_size):
    """One batch tile of the full 3-layer MLP + softplus + fused argmax."""
    f32 = jnp.float32
    w_dt = w_ref.dtype

    x = x_ref[...].astype(w_dt)                                # (bt, 128)

    # FC1 + ReLU
    z1 = jnp.dot(x, w_ref[0], preferred_element_type=f32) + b_ref[0]
    h1 = jnp.maximum(z1, 0.0)

    # FC2 + ReLU
    z2 = jnp.dot(h1.astype(w_dt), w_ref[1], preferred_element_type=f32) + b_ref[1]
    h2 = jnp.maximum(z2, 0.0)

    # FC3 + numerically stable softplus: max(z,0) + log1p(exp(-|z|))
    z3 = jnp.dot(h2.astype(w_dt), w_ref[2], preferred_element_type=f32) + b_ref[2]
    sp = jnp.maximum(z3, 0.0) + jnp.log1p(jnp.exp(-jnp.abs(z3)))

    q_ref[...] = sp.astype(q_ref.dtype)                        # lane-dense store

    # Fused argmax over the real action lanes (get_max_action). softplus >= 0,
    # so masking padded lanes with -1.0 guarantees they never win.
    lane = jax.lax.broadcasted_iota(jnp.int32, sp.shape, 1)    # (bt, 128)
    masked = jnp.where(lane < action_size, sp, -1.0)
    row_max = jnp.max(masked, axis=-1, keepdims=True)
    cand = jnp.where(masked >= row_max, lane, LANE)            # first max -> min idx
    amax_ref[...] = jnp.min(cand, axis=-1, keepdims=True).astype(jnp.int32)


def pack_params(w1, b1, w2, b2, w3, b3, param_dtype=jnp.float32):
    """Pack the three Linear layers into one weight slab and one bias slab.

    Weights are (in_features, out_features) (transposed vs. torch Linear);
    biases may be (out,) or (1, out). All layer widths must be <= 128.
    Use param_dtype=jnp.bfloat16 on v6e/v7x to halve weight DMA bytes.
    """
    for w in (w1, w2, w3):
        assert w.shape[0] <= LANE and w.shape[1] <= LANE, (
            "pack_params only supports layer widths <= 128")
        # TODO(synk): tile the K/N dims for layers_size > 128.

    def pad_w(w):
        buf = jnp.zeros((LANE, LANE), param_dtype)
        return buf.at[: w.shape[0], : w.shape[1]].set(w.astype(param_dtype))

    def pad_b(b):
        b = jnp.reshape(b, (1, -1)).astype(jnp.float32)
        return jnp.zeros((1, LANE), jnp.float32).at[:, : b.shape[1]].set(b)

    w_pack = jnp.stack([pad_w(w1), pad_w(w2), pad_w(w3)])      # (3, 128, 128)
    b_pack = jnp.stack([pad_b(b1), pad_b(b2), pad_b(b3)])      # (3, 1, 128)
    return w_pack, b_pack


@functools.partial(jax.jit, static_argnames=("action_size",))
def epn_forward(x, w_pack, b_pack, *, action_size):
    """Returns (qvals[batch, action_size], argmax[batch] int32)."""
    batch, d_in = x.shape
    assert d_in <= LANE, "states_size must be <= 128 for this packing"

    bt = min(MAX_BATCH_TILE, _round_up(batch, 8))
    padded_batch = _round_up(batch, bt)

    # Zero-pad batch to whole tiles and features to the lane width.
    x_p = jnp.zeros((padded_batch, LANE), x.dtype).at[:batch, :d_in].set(x)

    grid = (padded_batch // bt,)

    flops = 2 * padded_batch * LANE * LANE * 3
    transcendentals = 2 * padded_batch * LANE
    bytes_accessed = int(
        x_p.size * x_p.dtype.itemsize
        + w_pack.size * w_pack.dtype.itemsize
        + b_pack.size * b_pack.dtype.itemsize
        + padded_batch * LANE * 4   # q output
        + padded_batch * 4          # argmax output
    )

    q_pad, amax = pl.pallas_call(
        functools.partial(_epn_kernel, action_size=action_size),
        out_shape=(
            jax.ShapeDtypeStruct((padded_batch, LANE), jnp.float32),
            jax.ShapeDtypeStruct((padded_batch, 1), jnp.int32),
        ),
        grid=grid,
        in_specs=[
            pl.BlockSpec((bt, LANE), lambda i: (i, 0)),           # x batch tile
            pl.BlockSpec((3, LANE, LANE), lambda i: (0, 0, 0)),   # resident W slab
            pl.BlockSpec((3, 1, LANE), lambda i: (0, 0, 0)),      # resident biases
        ],
        out_specs=(
            pl.BlockSpec((bt, LANE), lambda i: (i, 0)),           # lane-dense q
            pl.BlockSpec((bt, 1), lambda i: (i, 0)),              # fused argmax
        ),
        compiler_params=pltpu.CompilerParams(
            dimension_semantics=("parallel",)),
        cost_estimate=pl.CostEstimate(
            flops=flops,
            transcendentals=transcendentals,
            bytes_accessed=bytes_accessed),
    )(x_p, w_pack, b_pack)

    return q_pad[:batch, :action_size], amax[:batch, 0]


def xavier_uniform(key, fan_in, fan_out, dtype=jnp.float32):
    """torch.nn.init.xavier_uniform_ equivalent; returned as (in, out)."""
    bound = math.sqrt(6.0 / (fan_in + fan_out))
    return jax.random.uniform(key, (fan_in, fan_out), dtype, -bound, bound)


def linear_bias(key, fan_in, fan_out, dtype=jnp.float32):
    """PyTorch nn.Linear default bias init: U(-1/sqrt(fan_in), 1/sqrt(fan_in))."""
    bound = 1.0 / math.sqrt(fan_in)
    return jax.random.uniform(key, (1, fan_out), dtype, -bound, bound)


if __name__ == "__main__":
    # Settings consistent with the PyTorch module:
    #   states_size = 32, settings['layers_sizes'][0] = 32 -> layers_size = 64,
    #   action_size = 8, batch = 8, noisy_nets = False.
    states_size = 32
    layers_size = 32 * 2
    action_size = 8
    batch = 8

    key = jax.random.PRNGKey(0)
    kx, k1, k2, k3, kb1, kb2, kb3 = jax.random.split(key, 7)

    x = jax.random.normal(kx, (batch, states_size), jnp.float32)

    w1 = xavier_uniform(k1, states_size, layers_size)
    b1 = linear_bias(kb1, states_size, layers_size)
    w2 = xavier_uniform(k2, layers_size, layers_size)
    b2 = linear_bias(kb2, layers_size, layers_size)
    w3 = xavier_uniform(k3, layers_size, action_size)
    b3 = linear_bias(kb3, layers_size, action_size)

    # Pack once (reused every step). Use param_dtype=jnp.bfloat16 on v6e/v7x.
    w_pack, b_pack = pack_params(w1, b1, w2, b2, w3, b3, param_dtype=jnp.float32)

    qvals, amax = epn_forward(x, w_pack, b_pack, action_size=action_size)
    jax.block_until_ready((qvals, amax))

    # Reference check in plain JAX (same math).
    def ref(x):
        h = jnp.maximum(x @ w1 + b1, 0.0)
        h = jnp.maximum(h @ w2 + b2, 0.0)
        return jax.nn.softplus(h @ w3 + b3)

    expected = ref(x)
    assert qvals.shape == (batch, action_size)
    assert amax.shape == (batch,)
    assert jnp.allclose(qvals, expected, atol=1e-5, rtol=1e-5)

    # Fused argmax must always pick a maximal q-value per row.
    picked = expected[jnp.arange(batch), amax]
    assert bool(jnp.all(jnp.abs(picked - jnp.max(expected, axis=-1)) <= 1e-5))

    # get_max_action equivalent (host glue, already computed in-kernel).
    _ = int(amax[0])

    print("KERNEL_OK")
</pallas_src>

<mosaic_0001>
module attributes {stable_mosaic.version = 11 : i64} {
  func.func @_epn_kernel(%arg0: i32, %arg1: memref<8x128xf32, #tpu.memory_space<vmem>>, %arg2: memref<3x128x128xf32, #tpu.memory_space<vmem>>, %arg3: memref<3x1x128xf32, #tpu.memory_space<vmem>>, %arg4: memref<8x128xf32, #tpu.memory_space<vmem>>, %arg5: memref<8x1xi32, #tpu.memory_space<vmem>>) attributes {dimension_semantics = [#tpu.dimension_semantics<parallel>], iteration_bounds = array<i64: 1>, scalar_prefetch = 0 : i64, scratch_operands = 0 : i64, tpu.core_type = #tpu.core_type<tc>, window_params = [{transform_indices = @transform_0, window_bounds = array<i64: 8, 128>}, {pipeline_mode = #tpu.pipeline_mode<synchronous>, transform_indices = @transform_1, window_bounds = array<i64: 3, 128, 128>}, {pipeline_mode = #tpu.pipeline_mode<synchronous>, transform_indices = @transform_2, window_bounds = array<i64: 3, 1, 128>}, {transform_indices = @transform_3, window_bounds = array<i64: 8, 128>}, {transform_indices = @transform_4, window_bounds = array<i64: 8, 1>}]} {
    %c0 = arith.constant 0 : index
    %c0_0 = arith.constant 0 : index
    %0 = vector.load %arg1[%c0, %c0_0] : memref<8x128xf32, #tpu.memory_space<vmem>>, vector<8x128xf32>
    %c0_1 = arith.constant 0 : index
    %c0_2 = arith.constant 0 : index
    %c0_3 = arith.constant 0 : index
    %1 = vector.load %arg2[%c0_1, %c0_2, %c0_3] : memref<3x128x128xf32, #tpu.memory_space<vmem>>, vector<1x128x128xf32>
    %2 = vector.shape_cast %1 : vector<1x128x128xf32> to vector<128x128xf32>
    %cst = arith.constant dense<0.000000e+00> : vector<8x128xf32>
    %3 = tpu.matmul %0, %2, %cst {dimension_numbers = #tpu.dot_dimension_numbers<[1], [0], [0], [1], [0, 0, 1, 1], [], []>} : vector<8x128xf32>, vector<128x128xf32>, vector<8x128xf32> -> vector<8x128xf32>
    %c0_4 = arith.constant 0 : index
    %c0_5 = arith.constant 0 : index
    %c0_6 = arith.constant 0 : index
    %4 = vector.load %arg3[%c0_4, %c0_5, %c0_6] : memref<3x1x128xf32, #tpu.memory_space<vmem>>, vector<1x1x128xf32>
    %5 = vector.shape_cast %4 : vector<1x1x128xf32> to vector<1x128xf32>
    %6 = vector.broadcast %5 : vector<1x128xf32> to vector<8x128xf32>
    %7 = arith.addf %3, %6 : vector<8x128xf32>
    %cst_7 = arith.constant 0.000000e+00 : f32
    %8 = vector.broadcast %cst_7 : f32 to vector<8x128xf32>
    %9 = arith.maximumf %7, %8 : vector<8x128xf32>
    %c1 = arith.constant 1 : index
    %c0_8 = arith.constant 0 : index
    %c0_9 = arith.constant 0 : index
    %10 = vector.load %arg2[%c1, %c0_8, %c0_9] : memref<3x128x128xf32, #tpu.memory_space<vmem>>, vector<1x128x128xf32>
    %11 = vector.shape_cast %10 : vector<1x128x128xf32> to vector<128x128xf32>
    %cst_10 = arith.constant dense<0.000000e+00> : vector<8x128xf32>
    %12 = tpu.matmul %9, %11, %cst_10 {dimension_numbers = #tpu.dot_dimension_numbers<[1], [0], [0], [1], [0, 0, 1, 1], [], []>} : vector<8x128xf32>, vector<128x128xf32>, vector<8x128xf32> -> vector<8x128xf32>
    %c1_11 = arith.constant 1 : index
    %c0_12 = arith.constant 0 : index
    %c0_13 = arith.constant 0 : index
    %13 = vector.load %arg3[%c1_11, %c0_12, %c0_13] : memref<3x1x128xf32, #tpu.memory_space<vmem>>, vector<1x1x128xf32>
    %14 = vector.shape_cast %13 : vector<1x1x128xf32> to vector<1x128xf32>
    %15 = vector.broadcast %14 : vector<1x128xf32> to vector<8x128xf32>
    %16 = arith.addf %12, %15 : vector<8x128xf32>
    %cst_14 = arith.constant 0.000000e+00 : f32
    %17 = vector.broadcast %cst_14 : f32 to vector<8x128xf32>
    %18 = arith.maximumf %16, %17 : vector<8x128xf32>
    %c2 = arith.constant 2 : index
    %c0_15 = arith.constant 0 : index
    %c0_16 = arith.constant 0 : index
    %19 = vector.load %arg2[%c2, %c0_15, %c0_16] : memref<3x128x128xf32, #tpu.memory_space<vmem>>, vector<1x128x128xf32>
    %20 = vector.shape_cast %19 : vector<1x128x128xf32> to vector<128x128xf32>
    %cst_17 = arith.constant dense<0.000000e+00> : vector<8x128xf32>
    %21 = tpu.matmul %18, %20, %cst_17 {dimension_numbers = #tpu.dot_dimension_numbers<[1], [0], [0], [1], [0, 0, 1, 1], [], []>} : vector<8x128xf32>, vector<128x128xf32>, vector<8x128xf32> -> vector<8x128xf32>
    %c2_18 = arith.constant 2 : index
    %c0_19 = arith.constant 0 : index
    %c0_20 = arith.constant 0 : index
    %22 = vector.load %arg3[%c2_18, %c0_19, %c0_20] : memref<3x1x128xf32, #tpu.memory_space<vmem>>, vector<1x1x128xf32>
    %23 = vector.shape_cast %22 : vector<1x1x128xf32> to vector<1x128xf32>
    %24 = vector.broadcast %23 : vector<1x128xf32> to vector<8x128xf32>
    %25 = arith.addf %21, %24 : vector<8x128xf32>
    %cst_21 = arith.constant 0.000000e+00 : f32
    %26 = vector.broadcast %cst_21 : f32 to vector<8x128xf32>
    %27 = arith.maximumf %25, %26 : vector<8x128xf32>
    %28 = math.absf %25 : vector<8x128xf32>
    %cst_22 = arith.constant 0.000000e+00 : f32
    %29 = vector.broadcast %cst_22 : f32 to vector<8x128xf32>
    %30 = arith.subf %29, %28 : vector<8x128xf32>
    %31 = math.exp %30 : vector<8x128xf32>
    %32 = math.log1p %31 : vector<8x128xf32>
    %33 = arith.addf %27, %32 : vector<8x128xf32>
    %c0_23 = arith.constant 0 : index
    %c0_24 = arith.constant 0 : index
    %34 = vector.load %arg4[%c0_23, %c0_24] : memref<8x128xf32, #tpu.memory_space<vmem>>, vector<8x128xf32>
    tpu.vector_store %arg4[%c0_23, %c0_24], %33 {strides = array<i32>} : memref<8x128xf32, #tpu.memory_space<vmem>>, vector<8x128xf32>,
    %35 = tpu.iota {dimensions = array<i32: 1>} : vector<8x128xi32>
    %c8_i32 = arith.constant 8 : i32
    %36 = vector.broadcast %c8_i32 : i32 to vector<8x128xi32>
    %37 = arith.cmpi slt, %35, %36 : vector<8x128xi32>
    %cst_25 = arith.constant -1.000000e+00 : f32
    %38 = vector.broadcast %cst_25 : f32 to vector<8x128xf32>
    %39 = arith.select %37, %33, %38 : vector<8x128xi1>, vector<8x128xf32>
    %cst_26 = arith.constant dense<0xFF800000> : vector<8xf32>
    %40 = vector.multi_reduction <maximumf>, %39, %cst_26 [1] : vector<8x128xf32> to vector<8xf32>
    %41 = vector.shape_cast %40 : vector<8xf32> to vector<8x1xf32>
    %42 = vector.broadcast %41 : vector<8x1xf32> to vector<8x128xf32>
    %43 = arith.cmpf oge, %39, %42 : vector<8x128xf32>
    %c128_i32 = arith.constant 128 : i32
    %44 = vector.broadcast %c128_i32 : i32 to vector<8x128xi32>
    %45 = arith.select %43, %35, %44 : vector<8x128xi1>, vector<8x128xi32>
    %cst_27 = arith.constant dense<2147483647> : vector<8xi32>
    %46 = vector.multi_reduction <minsi>, %45, %cst_27 [1] : vector<8x128xi32> to vector<8xi32>
    %47 = vector.shape_cast %46 : vector<8xi32> to vector<8x1xi32>
    %c0_28 = arith.constant 0 : index
    %c0_29 = arith.constant 0 : index
    %48 = vector.load %arg5[%c0_28, %c0_29] : memref<8x1xi32, #tpu.memory_space<vmem>>, vector<8x1xi32>
    tpu.vector_store %arg5[%c0_28, %c0_29], %47 {strides = array<i32>} : memref<8x1xi32, #tpu.memory_space<vmem>>, vector<8x1xi32>,
    return
  }
  func.func @transform_0(%arg0: i32) -> (i32, i32) {
    %c0_i32 = arith.constant 0 : i32
    %c0_i32_0 = arith.constant 0 : i32
    return %arg0, %c0_i32 : i32, i32
  }
  func.func @transform_1(%arg0: i32) -> (i32, i32, i32) {
    %c0_i32 = arith.constant 0 : i32
    %c0_i32_0 = arith.constant 0 : i32
    %c0_i32_1 = arith.constant 0 : i32
    %c0_i32_2 = arith.constant 0 : i32
    return %c0_i32, %c0_i32_0, %c0_i32_1 : i32, i32, i32
  }
  func.func @transform_2(%arg0: i32) -> (i32, i32, i32) {
    %c0_i32 = arith.constant 0 : i32
    %c0_i32_0 = arith.constant 0 : i32
    %c0_i32_1 = arith.constant 0 : i32
    %c0_i32_2 = arith.constant 0 : i32
    return %c0_i32, %c0_i32_0, %c0_i32_1 : i32, i32, i32
  }
  func.func @transform_3(%arg0: i32) -> (i32, i32) {
    %c0_i32 = arith.constant 0 : i32
    %c0_i32_0 = arith.constant 0 : i32
    return %arg0, %c0_i32 : i32, i32
  }
  func.func @transform_4(%arg0: i32) -> (i32, i32) {
    %c0_i32 = arith.constant 0 : i32
    %c0_i32_0 = arith.constant 0 : i32
    return %arg0, %c0_i32 : i32, i32
  }
}

</mosaic_0001>

<llo_original>
// kernel: epn_forward.1
$region0: #{epn_forward.1}
  #allocation0 [shape = 'u32[]', space=smem, size = 0x4, offset = 0x4, fixed_abs, tag = 'smem constant byte address 0x4 - core index']
  #allocation1 [shape = 'u32[144,128]{1,0:T(1,128)}', space=vmem, size = 0x12000, scoped, tag = 'internal scratch']
  %s0 = inlined_call_operand.vmem [shape: f32[8,128], index: 0, kind: input, shape index: {}]
  %s1 = inlined_call_operand.hbm [shape: f32[3,128,128], index: 1, kind: input, shape index: {}]
  %s2 = inlined_call_operand.vmem [shape: f32[3,1,128], index: 2, kind: input, shape index: {}]
  %s3 = inlined_call_operand.hbm [shape: f32[8,128], index: 3, kind: output, shape index: {0}]
  %s4 = inlined_call_operand.vmem [shape: s32[8,1], index: 4, kind: output, shape index: {1}]
  %5 = xla_tuple %s3, %s4
  %s6 = sld [smem:[#allocation0]]
  $region34: #{epn_forward.1} parent=0
    _
  %s8 = ssub.s32 1, %s6
  %s9 = scalar_select 0, %s8, %s6
  $region1: #{epn_forward.1} parent=0
    #allocation2 [shape = 'u8[196608]{0}', space=vmem, size = 0x30000, scoped, tag = 'input window, operand 1, single buffered']
    #allocation3 [shape = 's32[1]{0}', space=sflag, size = 0x4, scoped, tag = 'scoped memory for epn_forward.1']
    #allocation4 [shape = 's32[1]{0}', space=sflag, size = 0x4, scoped, tag = 'scoped memory for epn_forward.1']
    #allocation5 [shape = 'u8[4096]{0}', space=vmem, size = 0x1000, scoped, tag = 'output window, operand 0, single buffered']
    %10 = vsyncpa [#allocation3], 0
    %11 = vsyncpa [#allocation4], 0
    // Predicated region
    $region2: #{epn_forward.1} parent=1 // pred_check
      _
    $region3: #{epn_forward.1} parent=1 // pred_check_branch
      %13 = sbr.rel (0) target = $region5
    $region4: #{epn_forward.1} parent=1 // pred_region
      _
    $region5: #{epn_forward.1} parent=1 // pred_fallthru
      _
    // Predicated region
    $region6: #{epn_forward.1} parent=1 // pred_check
      _
    $region7: #{epn_forward.1} parent=1 // pred_check_branch
      %15 = sbr.rel (0) target = $region9
    $region8: #{epn_forward.1} parent=1 // pred_region
      %s17 = ssub.s32 6144, 6144
      %18 = vsyncadd [#allocation3], %s17
      %s19 = sshll.u32 [#allocation2], 4
      %s20 = int_to_ptr.vmem [resolvable:$true] %s19
      %25 = dma.hbm_to_vmem [thread:$0]  %s1, 6144, %s20, [#allocation3], 128, 128, 8
    $region9: #{epn_forward.1} parent=1 // pred_fallthru
      _
    // Predicated region
    $region10: #{epn_forward.1} parent=1 // pred_check
      _
    $region11: #{epn_forward.1} parent=1 // pred_check_branch
      %27 = sbr.rel (0) target = $region13
    $region12: #{epn_forward.1} parent=1 // pred_region
      _
    $region13: #{epn_forward.1} parent=1 // pred_fallthru
      _
    // Predicated region
    $region14: #{epn_forward.1} parent=1 // pred_check
      _
    $region15: #{epn_forward.1} parent=1 // pred_check_branch
      %29 = sbr.rel (0) target = $region17
    $region16: #{epn_forward.1} parent=1 // pred_region
      %30 = dma.done [#allocation3], 6144
    $region17: #{epn_forward.1} parent=1 // pred_fallthru
      _
    %v31 = vld [vmem:[%s0] sm:$0xff]
    %v32 = vld [vmem:[#allocation2] sm:$0xff]
    %v33 = vld [vmem:[#allocation2 + $0x8] sm:$0xff]
    %v34 = vld [vmem:[#allocation2 + $0x10] sm:$0xff]
    %v35 = vld [vmem:[#allocation2 + $0x18] sm:$0xff]
    %v36 = vld [vmem:[#allocation2 + $0x20] sm:$0xff]
    %v37 = vld [vmem:[#allocation2 + $0x28] sm:$0xff]
    %v38 = vld [vmem:[#allocation2 + $0x30] sm:$0xff]
    %v39 = vld [vmem:[#allocation2 + $0x38] sm:$0xff]
    %v40 = vld [vmem:[#allocation2 + $0x40] sm:$0xff]
    %v41 = vld [vmem:[#allocation2 + $0x48] sm:$0xff]
    %v42 = vld [vmem:[#allocation2 + $0x50] sm:$0xff]
    %v43 = vld [vmem:[#allocation2 + $0x58] sm:$0xff]
    %v44 = vld [vmem:[#allocation2 + $0x60] sm:$0xff]
    %v45 = vld [vmem:[#allocation2 + $0x68] sm:$0xff]
    %v46 = vld [vmem:[#allocation2 + $0x70] sm:$0xff]
    %v47 = vld [vmem:[#allocation2 + $0x78] sm:$0xff]
    %v48 = vld [vmem:[%s2] sm:$0x1]
    %v50 = vlaneseq
    %v51 = vshrl.u32 %v50, 7
    %v52 = vsub.s32 0, %v51
    %v53 = vrot.slane %v48, %v52
    %55 = vmatprep.subr.mxu0 0.0
    %56 = vmatpush1.msra.mxu0 %v47
    %57 = vmatprep.subr.mxu0 0.0
    %58 = vmatpush1.msra.mxu0 %v46
    %59 = vmatprep.subr.mxu0 0.0
    %60 = vmatpush1.msra.mxu0 %v45
    %61 = vmatprep.subr.mxu0 0.0
    %62 = vmatpush1.msra.mxu0 %v44
    %63 = vmatprep.subr.mxu0 0.0
    %64 = vmatpush1.msra.mxu0 %v43
    %65 = vmatprep.subr.mxu0 0.0
    %66 = vmatpush1.msra.mxu0 %v42
    %67 = vmatprep.subr.mxu0 0.0
    %68 = vmatpush1.msra.mxu0 %v41
    %69 = vmatprep.subr.mxu0 0.0
    %70 = vmatpush1.msra.mxu0 %v40
    %71 = vmatprep.subr.mxu0 0.0
    %72 = vmatpush1.msra.mxu0 %v39
    %73 = vmatprep.subr.mxu0 0.0
    %74 = vmatpush1.msra.mxu0 %v38
    %75 = vmatprep.subr.mxu0 0.0
    %76 = vmatpush1.msra.mxu0 %v37
    %77 = vmatprep.subr.mxu0 0.0
    %78 = vmatpush1.msra.mxu0 %v36
    %79 = vmatprep.subr.mxu0 0.0
    %80 = vmatpush1.msra.mxu0 %v35
    %81 = vmatprep.subr.mxu0 0.0
    %82 = vmatpush1.msra.mxu0 %v34
    %83 = vmatprep.subr.mxu0 0.0
    %84 = vmatpush1.msra.mxu0 %v33
    %85 = vmatprep.subr.mxu0 0.0
    %86 = vmatpush1.msra.mxu0 %v32
    %87 = vmatprep.subr.mxu0 0.0
    %88 = vmatpush2.msra.mxu0 0.0
    %89 = vmatprep.subr.mxu0 0.0
    %90 = vmatpush2.msra.mxu0 0.0
    %91 = vmatprep.subr.mxu0 0.0
    %92 = vmatpush2.msra.mxu0 0.0
    %93 = vmatprep.subr.mxu0 0.0
    %94 = vmatpush2.msra.mxu0 0.0
    %95 = vmatprep.subr.mxu0 0.0
    %96 = vmatpush2.msra.mxu0 0.0
    %97 = vmatprep.subr.mxu0 0.0
    %98 = vmatpush2.msra.mxu0 0.0
    %99 = vmatprep.subr.mxu0 0.0
    %100 = vmatpush2.msra.mxu0 0.0
    %101 = vmatprep.subr.mxu0 0.0
    %102 = vmatpush2.msra.mxu0 0.0
    %103 = vmatprep.subr.mxu0 0.0
    %104 = vmatpush2.msra.mxu0 0.0
    %105 = vmatprep.subr.mxu0 0.0
    %106 = vmatpush2.msra.mxu0 0.0
    %107 = vmatprep.subr.mxu0 0.0
    %108 = vmatpush2.msra.mxu0 0.0
    %109 = vmatprep.subr.mxu0 0.0
    %110 = vmatpush2.msra.mxu0 0.0
    %111 = vmatprep.subr.mxu0 0.0
    %112 = vmatpush2.msra.mxu0 0.0
    %113 = vmatprep.subr.mxu0 0.0
    %114 = vmatpush2.msra.mxu0 0.0
    %115 = vmatprep.subr.mxu0 0.0
    %116 = vmatpush2.msra.mxu0 0.0
    %117 = vmatprep.subr.mxu0 0.0
    %118 = vmatpush2.msra.mxu0 0.0
    %119 = vmatprep.mubr.f32.mxu0 0.0
    %120 = vmatmul.mubr.f32.gmra.mxu0 %v31
    %v121 = vpop.f32.mrf.mxu0
    %v122 = vadd.f32 %v53, %v121
    %v123 = vpop.f32.mrf.mxu0
    %124 = vdwg.mxu0
    %v125 = vmax.f32 %v122, 0.0
    %s126 = scalar_lea.vmem [#allocation2], 128
    %v127 = vld [vmem:[%s126] sm:$0xff]
    %v128 = vld [vmem:[%s126 + $0x8] sm:$0xff]
    %v129 = vld [vmem:[%s126 + $0x10] sm:$0xff]
    %v130 = vld [vmem:[%s126 + $0x18] sm:$0xff]
    %v131 = vld [vmem:[%s126 + $0x20] sm:$0xff]
    %v132 = vld [vmem:[%s126 + $0x28] sm:$0xff]
    %v133 = vld [vmem:[%s126 + $0x30] sm:$0xff]
    %v134 = vld [vmem:[%s126 + $0x38] sm:$0xff]
    %v135 = vld [vmem:[%s126 + $0x40] sm:$0xff]
    %v136 = vld [vmem:[%s126 + $0x48] sm:$0xff]
    %v137 = vld [vmem:[%s126 + $0x50] sm:$0xff]
    %v138 = vld [vmem:[%s126 + $0x58] sm:$0xff]
    %v139 = vld [vmem:[%s126 + $0x60] sm:$0xff]
    %v140 = vld [vmem:[%s126 + $0x68] sm:$0xff]
    %v141 = vld [vmem:[%s126 + $0x70] sm:$0xff]
    %v142 = vld [vmem:[%s126 + $0x78] sm:$0xff]
    %s143 = scalar_lea.vmem %s2, 1
    %v144 = vld [vmem:[%s143] sm:$0x1]
    %v146 = vlaneseq
    %v147 = vshrl.u32 %v146, 7
    %v148 = vsub.s32 0, %v147
    %v149 = vrot.slane %v144, %v148
    %151 = vmatprep.subr.mxu0 0.0
    %152 = vmatpush1.msra.mxu0 %v142
    %153 = vmatprep.subr.mxu0 0.0
    %154 = vmatpush1.msra.mxu0 %v141
    %155 = vmatprep.subr.mxu0 0.0
    %156 = vmatpush1.msra.mxu0 %v140
    %157 = vmatprep.subr.mxu0 0.0
    %158 = vmatpush1.msra.mxu0 %v139
    %159 = vmatprep.subr.mxu0 0.0
    %160 = vmatpush1.msra.mxu0 %v138
    %161 = vmatprep.subr.mxu0 0.0
    %162 = vmatpush1.msra.mxu0 %v137
    %163 = vmatprep.subr.mxu0 0.0
    %164 = vmatpush1.msra.mxu0 %v136
    %165 = vmatprep.subr.mxu0 0.0
    %166 = vmatpush1.msra.mxu0 %v135
    %167 = vmatprep.subr.mxu0 0.0
    %168 = vmatpush1.msra.mxu0 %v134
    %169 = vmatprep.subr.mxu0 0.0
    %170 = vmatpush1.msra.mxu0 %v133
    %171 = vmatprep.subr.mxu0 0.0
    %172 = vmatpush1.msra.mxu0 %v132
    %173 = vmatprep.subr.mxu0 0.0
    %174 = vmatpush1.msra.mxu0 %v131
    %175 = vmatprep.subr.mxu0 0.0
    %176 = vmatpush1.msra.mxu0 %v130
    %177 = vmatprep.subr.mxu0 0.0
    %178 = vmatpush1.msra.mxu0 %v129
    %179 = vmatprep.subr.mxu0 0.0
    %180 = vmatpush1.msra.mxu0 %v128
    %181 = vmatprep.subr.mxu0 0.0
    %182 = vmatpush1.msra.mxu0 %v127
    %183 = vmatprep.subr.mxu0 0.0
    %184 = vmatpush2.msra.mxu0 0.0
    %185 = vmatprep.subr.mxu0 0.0
    %186 = vmatpush2.msra.mxu0 0.0
    %187 = vmatprep.subr.mxu0 0.0
    %188 = vmatpush2.msra.mxu0 0.0
    %189 = vmatprep.subr.mxu0 0.0
    %190 = vmatpush2.msra.mxu0 0.0
    %191 = vmatprep.subr.mxu0 0.0
    %192 = vmatpush2.msra.mxu0 0.0
    %193 = vmatprep.subr.mxu0 0.0
    %194 = vmatpush2.msra.mxu0 0.0
    %195 = vmatprep.subr.mxu0 0.0
    %196 = vmatpush2.msra.mxu0 0.0
    %197 = vmatprep.subr.mxu0 0.0
    %198 = vmatpush2.msra.mxu0 0.0
    %199 = vmatprep.subr.mxu0 0.0
    %200 = vmatpush2.msra.mxu0 0.0
    %201 = vmatprep.subr.mxu0 0.0
    %202 = vmatpush2.msra.mxu0 0.0
    %203 = vmatprep.subr.mxu0 0.0
    %204 = vmatpush2.msra.mxu0 0.0
    %205 = vmatprep.subr.mxu0 0.0
    %206 = vmatpush2.msra.mxu0 0.0
    %207 = vmatprep.subr.mxu0 0.0
    %208 = vmatpush2.msra.mxu0 0.0
    %209 = vmatprep.subr.mxu0 0.0
    %210 = vmatpush2.msra.mxu0 0.0
    %211 = vmatprep.subr.mxu0 0.0
    %212 = vmatpush2.msra.mxu0 0.0
    %213 = vmatprep.subr.mxu0 0.0
    %214 = vmatpush2.msra.mxu0 0.0
    %215 = vmatprep.mubr.f32.mxu0 0.0
    %216 = vmatmul.mubr.f32.gmra.mxu0 %v125
    %v217 = vpop.f32.mrf.mxu0
    %v218 = vadd.f32 %v149, %v217
    %v219 = vpop.f32.mrf.mxu0
    %220 = vdwg.mxu0
    %v221 = vmax.f32 %v218, 0.0
    %s222 = scalar_lea.vmem [#allocation2], 256
    %v223 = vld [vmem:[%s222] sm:$0xff]
    %v224 = vld [vmem:[%s222 + $0x8] sm:$0xff]
    %v225 = vld [vmem:[%s222 + $0x10] sm:$0xff]
    %v226 = vld [vmem:[%s222 + $0x18] sm:$0xff]
    %v227 = vld [vmem:[%s222 + $0x20] sm:$0xff]
    %v228 = vld [vmem:[%s222 + $0x28] sm:$0xff]
    %v229 = vld [vmem:[%s222 + $0x30] sm:$0xff]
    %v230 = vld [vmem:[%s222 + $0x38] sm:$0xff]
    %v231 = vld [vmem:[%s222 + $0x40] sm:$0xff]
    %v232 = vld [vmem:[%s222 + $0x48] sm:$0xff]
    %v233 = vld [vmem:[%s222 + $0x50] sm:$0xff]
    %v234 = vld [vmem:[%s222 + $0x58] sm:$0xff]
    %v235 = vld [vmem:[%s222 + $0x60] sm:$0xff]
    %v236 = vld [vmem:[%s222 + $0x68] sm:$0xff]
    %v237 = vld [vmem:[%s222 + $0x70] sm:$0xff]
    %v238 = vld [vmem:[%s222 + $0x78] sm:$0xff]
    %s239 = scalar_lea.vmem %s2, 2
    %v240 = vld [vmem:[%s239] sm:$0x1]
    %v242 = vlaneseq
    %v243 = vshrl.u32 %v242, 7
    %v244 = vsub.s32 0, %v243
    %v245 = vrot.slane %v240, %v244
    %247 = vmatprep.subr.mxu0 0.0
    %248 = vmatpush1.msra.mxu0 %v238
    %249 = vmatprep.subr.mxu0 0.0
    %250 = vmatpush1.msra.mxu0 %v237
    %251 = vmatprep.subr.mxu0 0.0
    %252 = vmatpush1.msra.mxu0 %v236
    %253 = vmatprep.subr.mxu0 0.0
    %254 = vmatpush1.msra.mxu0 %v235
    %255 = vmatprep.subr.mxu0 0.0
    %256 = vmatpush1.msra.mxu0 %v234
    %257 = vmatprep.subr.mxu0 0.0
    %258 = vmatpush1.msra.mxu0 %v233
    %259 = vmatprep.subr.mxu0 0.0
    %260 = vmatpush1.msra.mxu0 %v232
    %261 = vmatprep.subr.mxu0 0.0
    %262 = vmatpush1.msra.mxu0 %v231
    %263 = vmatprep.subr.mxu0 0.0
    %264 = vmatpush1.msra.mxu0 %v230
    %265 = vmatprep.subr.mxu0 0.0
    %266 = vmatpush1.msra.mxu0 %v229
    %267 = vmatprep.subr.mxu0 0.0
    %268 = vmatpush1.msra.mxu0 %v228
    %269 = vmatprep.subr.mxu0 0.0
    %270 = vmatpush1.msra.mxu0 %v227
    %271 = vmatprep.subr.mxu0 0.0
    %272 = vmatpush1.msra.mxu0 %v226
    %273 = vmatprep.subr.mxu0 0.0
    %274 = vmatpush1.msra.mxu0 %v225
    %275 = vmatprep.subr.mxu0 0.0
    %276 = vmatpush1.msra.mxu0 %v224
    %277 = vmatprep.subr.mxu0 0.0
    %278 = vmatpush1.msra.mxu0 %v223
    %279 = vmatprep.subr.mxu0 0.0
    %280 = vmatpush2.msra.mxu0 0.0
    %281 = vmatprep.subr.mxu0 0.0
    %282 = vmatpush2.msra.mxu0 0.0
    %283 = vmatprep.subr.mxu0 0.0
    %284 = vmatpush2.msra.mxu0 0.0
    %285 = vmatprep.subr.mxu0 0.0
    %286 = vmatpush2.msra.mxu0 0.0
    %287 = vmatprep.subr.mxu0 0.0
    %288 = vmatpush2.msra.mxu0 0.0
    %289 = vmatprep.subr.mxu0 0.0
    %290 = vmatpush2.msra.mxu0 0.0
    %291 = vmatprep.subr.mxu0 0.0
    %292 = vmatpush2.msra.mxu0 0.0
    %293 = vmatprep.subr.mxu0 0.0
    %294 = vmatpush2.msra.mxu0 0.0
    %295 = vmatprep.subr.mxu0 0.0
    %296 = vmatpush2.msra.mxu0 0.0
    %297 = vmatprep.subr.mxu0 0.0
    %298 = vmatpush2.msra.mxu0 0.0
    %299 = vmatprep.subr.mxu0 0.0
    %300 = vmatpush2.msra.mxu0 0.0
    %301 = vmatprep.subr.mxu0 0.0
    %302 = vmatpush2.msra.mxu0 0.0
    %303 = vmatprep.subr.mxu0 0.0
    %304 = vmatpush2.msra.mxu0 0.0
    %305 = vmatprep.subr.mxu0 0.0
    %306 = vmatpush2.msra.mxu0 0.0
    %307 = vmatprep.subr.mxu0 0.0
    %308 = vmatpush2.msra.mxu0 0.0
    %309 = vmatprep.subr.mxu0 0.0
    %310 = vmatpush2.msra.mxu0 0.0
    %311 = vmatprep.mubr.f32.mxu0 0.0
    %312 = vmatmul.mubr.f32.gmra.mxu0 %v221
    %v313 = vpop.f32.mrf.mxu0
    %v314 = vadd.f32 %v245, %v313
    %v315 = vpop.f32.mrf.mxu0
    %316 = vdwg.mxu0
    %v317 = vmax.f32 %v314, 0.0
    %v318 = vand.u32 2147483647, %v314
    %v319 = vsub.f32 0.0, %v318
    %v320 = vmul.f32 %v319, 1.442695
    %v321 = vpow.pop %v320
    %v322 = vadd.f32 %v321, 1.0
    %v323 = vlog2.pop %v322
    %v324 = vmul.f32 %v323, 0.6931472
    %v325 = vmul.f32 -0.5, %v321
    %v326 = vadd.f32 %v325, 1.0
    %v327 = vmul.f32 %v326, %v321
    %v328 = vand.u32 2147483647, %v321
    %vm329 = vcmp.lt.f32.partialorder %v328, 0.0004427343
    %v330 = vsel %vm329, %v327, %v324
    %v331 = vadd.f32 %v317, %v330
    %332 = vst [vmem:[#allocation5] sm:$0xff] %v331
    %v333 = vlaneseq
    %v334 = vand.u32 %v333, 127
    %vm335 = vcmp.lt.s32.totalorder %v334, 8
    %v336 = vsel %vm335, %v331, -1.0
    %337 = vmax.xlane.f32.xlu0 %v336
    %v338 = vpop.xlane.xlu0 %337
    %vm339 = vcmp.ge.f32.partialorder %v336, %v338
    %v340 = vsel %vm339, %v334, 128
    %v341 = vand.u32 %v340, 65535
    %v342 = vshra.s32 %v340, 16
    %v343 = vcvt.s32.f32 %v341
    %v344 = vcvt.s32.f32 %v342
    %345 = vmin.xlane.f32.xlu0 %v344
    %v346 = vpop.xlane.xlu0 %345
    %vm347 = vcmp.eq.f32.partialorder %v344, %v346
    %v348 = vsel %vm347, %v343, inf
    %349 = vmin.xlane.f32.xlu0 %v348
    %v350 = vpop.xlane.xlu0 %349
    %v351 = vcvt.f32.s32 %v350
    %v352 = vcvt.f32.s32 %v346
    %v353 = vshll.u32 %v352, 16
    %v354 = vadd.s32 %v353, %v351
    %vm355 = vcmask 7168
    %356 = vst.msk [vmem:[%s4] sm:$0xff] %vm355, %v354
    // Predicated region
    $region18: #{epn_forward.1} parent=1 // pred_check
      _
    $region19: #{epn_forward.1} parent=1 // pred_check_branch
      %358 = sbr.rel (0) target = $region21
    $region20: #{epn_forward.1} parent=1 // pred_region
      %s360 = ssub.s32 128, 128
      %361 = vsyncadd [#allocation4], %s360
      %s363 = sshll.u32 [#allocation5], 4
      %s364 = int_to_ptr.vmem [resolvable:$true] %s363
      %366 = dma.vmem_to_hbm [thread:$0]  %s364, 128, %s3, [#allocation4]
    $region21: #{epn_forward.1} parent=1 // pred_fallthru
      _
    // Predicated region
    $region22: #{epn_forward.1} parent=1 // pred_check
      _
    $region23: #{epn_forward.1} parent=1 // pred_check_branch
      %368 = sbr.rel (0) target = $region25
    $region24: #{epn_forward.1} parent=1 // pred_region
      _
    $region25: #{epn_forward.1} parent=1 // pred_fallthru
      _
    // Predicated region
    $region26: #{epn_forward.1} parent=1 // pred_check
      _
    $region27: #{epn_forward.1} parent=1 // pred_check_branch
      %370 = sbr.rel (0) target = $region29
    $region28: #{epn_forward.1} parent=1 // pred_region
      %371 = dma.done [#allocation4], 128
    $region29: #{epn_forward.1} parent=1 // pred_fallthru
      _
    // Predicated region
    $region30: #{epn_forward.1} parent=1 // pred_check
      _
    $region31: #{epn_forward.1} parent=1 // pred_check_branch
      %373 = sbr.rel (0) target = $region33
    $region32: #{epn_forward.1} parent=1 // pred_region
      _
    $region33: #{epn_forward.1} parent=1 // pred_fallthru
      _
    %374 = vsyncpa [#allocation3], 1
    %375 = vsyncpa [#allocation4], 1

</llo_original>
